<compile_context>
chip_gen: v5e
topology: v5e:2x2
jax: 0.10.0
libtpu: 0.0.40
codegen_flags: <defaults>
</compile_context>

<pallas_src>
import functools

import jax
import jax.numpy as jnp
from jax.experimental import pallas as pl
from jax.experimental.pallas import tpu as pltpu

_LANES = 128
_MAX_TILE_ROWS = 8192          # 8192 rows * 128 lanes * 4 B = 4 MiB per f32 block
_NEG_BIG = -1e30               # finite "-inf" sentinel (avoids inf-inf NaNs)


def _circle_loss_kernel(x_ref, out_ref,
                        mp_acc, sp_acc, mn_acc, sn_acc, *,
                        m: float, gamma: float,
                        n_p: int, n_n: int,
                        tiles_p: int, n_tiles: int,
                        tile_rows: int, sub: int):
    i = pl.program_id(0)

    @pl.when(i == 0)
    def _init():
        mp_acc[...] = jnp.full_like(mp_acc, _NEG_BIG)
        sp_acc[...] = jnp.zeros_like(sp_acc)
        mn_acc[...] = jnp.full_like(mn_acc, _NEG_BIG)
        sn_acc[...] = jnp.zeros_like(sn_acc)

    def _valid_mask(row_offset, n_valid):
        # Overflow-safe: compare row index and lane index separately.
        shape = (tile_rows // sub, sub, _LANES)
        v_ids = jax.lax.broadcasted_iota(jnp.int32, shape, 0)
        s_ids = jax.lax.broadcasted_iota(jnp.int32, shape, 1)
        l_ids = jax.lax.broadcasted_iota(jnp.int32, shape, 2)
        row = row_offset + v_ids * sub + s_ids
        full_rows = n_valid // _LANES          # static Python ints
        rem = n_valid % _LANES
        return (row < full_rows) | ((row == full_rows) & (l_ids < rem))

    def _online_update(logit3, m_acc, s_acc):
        # logit3: (tile_rows//sub, sub, 128).  Reduce only across vregs
        # (axis 0) -> pure VALU; no cross-sublane / cross-lane XLU work.
        tile_max = jnp.max(logit3, axis=0)                       # (sub, 128)
        m_new = jnp.maximum(m_acc[...], tile_max)
        s_tile = jnp.sum(jnp.exp(logit3 - m_new), axis=0)        # (sub, 128)
        s_acc[...] = s_acc[...] * jnp.exp(m_acc[...] - m_new) + s_tile
        m_acc[...] = m_new

    @pl.when(i < tiles_p)
    def _p_tile():
        s = x_ref[...].astype(jnp.float32)
        ap = jnp.maximum(-s + 1.0 + m, 0.0)            # clamp_min(-sp + 1 + m, 0)
        logit = -ap * (s - (1.0 - m)) * gamma          # -ap * (sp - delta_p) * gamma

        @pl.when(i < tiles_p - 1)                      # interior: fully valid
        def _interior():
            _online_update(logit, mp_acc, sp_acc)

        @pl.when(i == tiles_p - 1)                     # last sp tile: mask tail
        def _last():
            valid = _valid_mask(i * tile_rows, n_p)
            _online_update(jnp.where(valid, logit, _NEG_BIG), mp_acc, sp_acc)

    @pl.when(i >= tiles_p)
    def _n_tile():
        s = x_ref[...].astype(jnp.float32)
        an = jnp.maximum(s + m, 0.0)                   # clamp_min(sn + m, 0)
        logit = an * (s - m) * gamma                   # an * (sn - delta_n) * gamma

        @pl.when(i < n_tiles - 1)                      # interior: fully valid
        def _interior():
            _online_update(logit, mn_acc, sn_acc)

        @pl.when(i == n_tiles - 1)                     # last sn tile: mask tail
        def _last():
            valid = _valid_mask((i - tiles_p) * tile_rows, n_n)
            _online_update(jnp.where(valid, logit, _NEG_BIG), mn_acc, sn_acc)

    @pl.when(i == n_tiles - 1)
    def _finalize():
        # Single cross-lane/sublane reduce + transcendentals, once per call.
        # Fully-padded accumulator positions have m_acc == _NEG_BIG, so
        # exp(m_acc - big) == 0 zeroes their spurious exp(0) counts as long as
        # n_p, n_n >= 1 (asserted in the wrapper).
        big_p = jnp.max(mp_acc[...])
        lse_p = big_p + jnp.log(jnp.sum(sp_acc[...] * jnp.exp(mp_acc[...] - big_p)))
        big_n = jnp.max(mn_acc[...])
        lse_n = big_n + jnp.log(jnp.sum(sn_acc[...] * jnp.exp(mn_acc[...] - big_n)))
        z = lse_n + lse_p
        # Stable softplus: max(z, 0) + log1p(exp(-|z|))
        out_ref[0, 0] = jnp.maximum(z, 0.0) + jnp.log1p(jnp.exp(-jnp.abs(z)))


def _plan(n_p: int, n_n: int, dtype) -> tuple[int, int, int, int]:
    """Pick one tile size (rows) shared by both segments and padded row counts."""
    itemsize = jnp.dtype(dtype).itemsize
    sub = 8 * max(1, 4 // itemsize)          # packed sublane minimum: 8/16/32

    def rows_of(n):
        r = pl.cdiv(n, _LANES)
        return pl.cdiv(r, sub) * sub

    rows_p, rows_n = rows_of(n_p), rows_of(n_n)
    tile = min(_MAX_TILE_ROWS, max(rows_p, rows_n))   # multiple of `sub`
    rows_p_pad = pl.cdiv(rows_p, tile) * tile
    rows_n_pad = pl.cdiv(rows_n, tile) * tile
    return sub, tile, rows_p_pad, rows_n_pad


def circle_loss(sp: jax.Array, sn: jax.Array, *, m: float, gamma: float) -> jax.Array:
    """Pallas TPU implementation of CircleLoss.forward(sp, sn) -> scalar loss."""
    assert sp.ndim == 1 and sn.ndim == 1, "sp / sn are 1-D similarity vectors"
    n_p, n_n = int(sp.shape[0]), int(sn.shape[0])
    assert n_p >= 1 and n_n >= 1

    dtype = jnp.promote_types(sp.dtype, sn.dtype)
    sub, tile, rows_p_pad, rows_n_pad = _plan(n_p, n_n, dtype)
    tiles_p = rows_p_pad // tile
    tiles_n = rows_n_pad // tile
    n_tiles = tiles_p + tiles_n
    total_rows = rows_p_pad + rows_n_pad

    # One merged lane-dense slab: [sp | pad | sn | pad], shaped (rows//sub, sub, 128)
    # so in-kernel per-tile reductions stay at vreg granularity (no reshape needed).
    x = jnp.concatenate([
        jnp.pad(sp.astype(dtype), (0, rows_p_pad * _LANES - n_p)),
        jnp.pad(sn.astype(dtype), (0, rows_n_pad * _LANES - n_n)),
    ]).reshape(total_rows // sub, sub, _LANES)

    kernel = functools.partial(
        _circle_loss_kernel, m=float(m), gamma=float(gamma),
        n_p=n_p, n_n=n_n, tiles_p=tiles_p, n_tiles=n_tiles,
        tile_rows=tile, sub=sub)

    cost = pl.CostEstimate(
        flops=7 * (n_p + n_n),
        transcendentals=(n_p + n_n) + 8,
        bytes_accessed=x.size * x.dtype.itemsize + 4,
    )

    out = pl.pallas_call(
        kernel,
        out_shape=jax.ShapeDtypeStruct((1, 1), jnp.float32),
        grid_spec=pltpu.PrefetchScalarGridSpec(
            num_scalar_prefetch=0,
            grid=(n_tiles,),
            in_specs=[
                pl.BlockSpec((tile // sub, sub, _LANES), lambda i: (i, 0, 0)),
            ],
            out_specs=pl.BlockSpec(memory_space=pltpu.MemorySpace.SMEM),
            scratch_shapes=[pltpu.VMEM((sub, _LANES), jnp.float32)] * 4,
        ),
        compiler_params=pltpu.CompilerParams(
            dimension_semantics=("arbitrary",),   # carried accumulators
            vmem_limit_bytes=32 * 1024 * 1024,    # 2 x 4 MiB buffers + scratch
        ),
        cost_estimate=cost,
    )(x)
    return out[0, 0]


def circle_loss_ref(sp, sn, *, m, gamma):
    """Pure-JAX reference mirroring the PyTorch module exactly."""
    ap = jnp.maximum(-sp + 1.0 + m, 0.0)
    an = jnp.maximum(sn + m, 0.0)
    delta_p = 1.0 - m
    delta_n = m
    logit_p = -ap * (sp - delta_p) * gamma
    logit_n = an * (sn - delta_n) * gamma
    z = (jax.scipy.special.logsumexp(logit_n, axis=0)
         + jax.scipy.special.logsumexp(logit_p, axis=0))
    return jax.nn.softplus(z)


if __name__ == "__main__":
    m = 0.25
    gamma = 64.0

    key = jax.random.PRNGKey(0)
    kp, kn, kp2, kn2 = jax.random.split(key, 4)

    # Case 1: lane-aligned sizes (similarities in [-1, 1]).
    sp = jax.random.uniform(kp, (256,), jnp.float32, -1.0, 1.0)
    sn = jax.random.uniform(kn, (512,), jnp.float32, -1.0, 1.0)
    loss = jax.block_until_ready(circle_loss(sp, sn, m=m, gamma=gamma))
    ref = circle_loss_ref(sp, sn, m=m, gamma=gamma)
    assert jnp.allclose(loss, ref, rtol=2e-5, atol=1e-4), (loss, ref)

    # Case 2: ragged sizes (exercises the last-tile-only padding mask).
    sp2 = jax.random.uniform(kp2, (200,), jnp.float32, -1.0, 1.0)
    sn2 = jax.random.uniform(kn2, (385,), jnp.float32, -1.0, 1.0)
    loss2 = jax.block_until_ready(circle_loss(sp2, sn2, m=m, gamma=gamma))
    ref2 = circle_loss_ref(sp2, sn2, m=m, gamma=gamma)
    assert jnp.allclose(loss2, ref2, rtol=2e-5, atol=1e-4), (loss2, ref2)

    print("KERNEL_OK")
</pallas_src>

<mosaic_0001>
module attributes {stable_mosaic.version = 11 : i64} {
  func.func @_circle_loss_kernel(%arg0: i32, %arg1: memref<1x8x128xf32, #tpu.memory_space<vmem>>, %arg2: memref<1x1xf32, #tpu.memory_space<smem>>, %arg3: memref<8x128xf32, #tpu.memory_space<vmem>>, %arg4: memref<8x128xf32, #tpu.memory_space<vmem>>, %arg5: memref<8x128xf32, #tpu.memory_space<vmem>>, %arg6: memref<8x128xf32, #tpu.memory_space<vmem>>) attributes {dimension_semantics = [#tpu.dimension_semantics<arbitrary>], iteration_bounds = array<i64: 2>, scalar_prefetch = 0 : i64, scratch_operands = 4 : i64, tpu.core_type = #tpu.core_type<tc>, window_params = [{transform_indices = @transform_0, window_bounds = array<i64: 1, 8, 128>}, {transform_indices = @transform_1, window_bounds = array<i64: 1, 1>}]} {
    %c0_i32 = arith.constant 0 : i32
    %0 = arith.cmpi eq, %arg0, %c0_i32 : i32
    %1 = arith.extui %0 : i1 to i32
    %c0_i32_0 = arith.constant 0 : i32
    %2 = arith.cmpi ne, %1, %c0_i32_0 : i32
    scf.if %2 {
      %cst = arith.constant -1.000000e+30 : f32
      %12 = vector.broadcast %cst : f32 to vector<8x128xf32>
      %c0 = arith.constant 0 : index
      %c0_6 = arith.constant 0 : index
      %13 = vector.load %arg3[%c0, %c0_6] : memref<8x128xf32, #tpu.memory_space<vmem>>, vector<8x128xf32>
      tpu.vector_store %arg3[%c0, %c0_6], %12 {strides = array<i32>} : memref<8x128xf32, #tpu.memory_space<vmem>>, vector<8x128xf32>,
      %cst_7 = arith.constant 0.000000e+00 : f32
      %14 = vector.broadcast %cst_7 : f32 to vector<8x128xf32>
      %c0_8 = arith.constant 0 : index
      %c0_9 = arith.constant 0 : index
      %15 = vector.load %arg4[%c0_8, %c0_9] : memref<8x128xf32, #tpu.memory_space<vmem>>, vector<8x128xf32>
      tpu.vector_store %arg4[%c0_8, %c0_9], %14 {strides = array<i32>} : memref<8x128xf32, #tpu.memory_space<vmem>>, vector<8x128xf32>,
      %cst_10 = arith.constant -1.000000e+30 : f32
      %16 = vector.broadcast %cst_10 : f32 to vector<8x128xf32>
      %c0_11 = arith.constant 0 : index
      %c0_12 = arith.constant 0 : index
      %17 = vector.load %arg5[%c0_11, %c0_12] : memref<8x128xf32, #tpu.memory_space<vmem>>, vector<8x128xf32>
      tpu.vector_store %arg5[%c0_11, %c0_12], %16 {strides = array<i32>} : memref<8x128xf32, #tpu.memory_space<vmem>>, vector<8x128xf32>,
      %cst_13 = arith.constant 0.000000e+00 : f32
      %18 = vector.broadcast %cst_13 : f32 to vector<8x128xf32>
      %c0_14 = arith.constant 0 : index
      %c0_15 = arith.constant 0 : index
      %19 = vector.load %arg6[%c0_14, %c0_15] : memref<8x128xf32, #tpu.memory_space<vmem>>, vector<8x128xf32>
      tpu.vector_store %arg6[%c0_14, %c0_15], %18 {strides = array<i32>} : memref<8x128xf32, #tpu.memory_space<vmem>>, vector<8x128xf32>,
    } else {
    }
    %c1_i32 = arith.constant 1 : i32
    %3 = arith.cmpi slt, %arg0, %c1_i32 : i32
    %4 = arith.extui %3 : i1 to i32
    %c0_i32_1 = arith.constant 0 : i32
    %5 = arith.cmpi ne, %4, %c0_i32_1 : i32
    scf.if %5 {
      %c0 = arith.constant 0 : index
      %c0_6 = arith.constant 0 : index
      %c0_7 = arith.constant 0 : index
      %12 = vector.load %arg1[%c0, %c0_6, %c0_7] : memref<1x8x128xf32, #tpu.memory_space<vmem>>, vector<1x8x128xf32>
      %cst = arith.constant 0.000000e+00 : f32
      %13 = vector.broadcast %cst : f32 to vector<1x8x128xf32>
      %14 = arith.subf %13, %12 : vector<1x8x128xf32>
      %cst_8 = arith.constant 1.000000e+00 : f32
      %15 = vector.broadcast %cst_8 : f32 to vector<1x8x128xf32>
      %16 = arith.addf %14, %15 : vector<1x8x128xf32>
      %cst_9 = arith.constant 2.500000e-01 : f32
      %17 = vector.broadcast %cst_9 : f32 to vector<1x8x128xf32>
      %18 = arith.addf %16, %17 : vector<1x8x128xf32>
      %cst_10 = arith.constant 0.000000e+00 : f32
      %19 = vector.broadcast %cst_10 : f32 to vector<1x8x128xf32>
      %20 = arith.maximumf %18, %19 : vector<1x8x128xf32>
      %cst_11 = arith.constant 0.000000e+00 : f32
      %21 = vector.broadcast %cst_11 : f32 to vector<1x8x128xf32>
      %22 = arith.subf %21, %20 : vector<1x8x128xf32>
      %cst_12 = arith.constant 7.500000e-01 : f32
      %23 = vector.broadcast %cst_12 : f32 to vector<1x8x128xf32>
      %24 = arith.subf %12, %23 : vector<1x8x128xf32>
      %25 = arith.mulf %22, %24 : vector<1x8x128xf32>
      %cst_13 = arith.constant 6.400000e+01 : f32
      %26 = vector.broadcast %cst_13 : f32 to vector<1x8x128xf32>
      %27 = arith.mulf %25, %26 : vector<1x8x128xf32>
      %c0_i32_14 = arith.constant 0 : i32
      %28 = arith.cmpi slt, %arg0, %c0_i32_14 : i32
      %29 = arith.extui %28 : i1 to i32
      %c0_i32_15 = arith.constant 0 : i32
      %30 = arith.cmpi ne, %29, %c0_i32_15 : i32
      scf.if %30 {
        %cst_18 = arith.constant dense<0xFF800000> : vector<8x128xf32>
        %34 = vector.multi_reduction <maximumf>, %27, %cst_18 [0] : vector<1x8x128xf32> to vector<8x128xf32>
        %c0_19 = arith.constant 0 : index
        %c0_20 = arith.constant 0 : index
        %35 = vector.load %arg3[%c0_19, %c0_20] : memref<8x128xf32, #tpu.memory_space<vmem>>, vector<8x128xf32>
        %36 = arith.maximumf %35, %34 : vector<8x128xf32>
        %37 = vector.shape_cast %36 : vector<8x128xf32> to vector<1x8x128xf32>
        %38 = arith.subf %27, %37 : vector<1x8x128xf32>
        %39 = math.exp %38 : vector<1x8x128xf32>
        %cst_21 = arith.constant dense<0.000000e+00> : vector<8x128xf32>
        %40 = vector.multi_reduction <add>, %39, %cst_21 [0] : vector<1x8x128xf32> to vector<8x128xf32>
        %c0_22 = arith.constant 0 : index
        %c0_23 = arith.constant 0 : index
        %41 = vector.load %arg4[%c0_22, %c0_23] : memref<8x128xf32, #tpu.memory_space<vmem>>, vector<8x128xf32>
        %c0_24 = arith.constant 0 : index
        %c0_25 = arith.constant 0 : index
        %42 = vector.load %arg3[%c0_24, %c0_25] : memref<8x128xf32, #tpu.memory_space<vmem>>, vector<8x128xf32>
        %43 = arith.subf %42, %36 : vector<8x128xf32>
        %44 = math.exp %43 : vector<8x128xf32>
        %45 = arith.mulf %41, %44 : vector<8x128xf32>
        %46 = arith.addf %45, %40 : vector<8x128xf32>
        %c0_26 = arith.constant 0 : index
        %c0_27 = arith.constant 0 : index
        %47 = vector.load %arg4[%c0_26, %c0_27] : memref<8x128xf32, #tpu.memory_space<vmem>>, vector<8x128xf32>
        tpu.vector_store %arg4[%c0_26, %c0_27], %46 {strides = array<i32>} : memref<8x128xf32, #tpu.memory_space<vmem>>, vector<8x128xf32>,
        %c0_28 = arith.constant 0 : index
        %c0_29 = arith.constant 0 : index
        %48 = vector.load %arg3[%c0_28, %c0_29] : memref<8x128xf32, #tpu.memory_space<vmem>>, vector<8x128xf32>
        tpu.vector_store %arg3[%c0_28, %c0_29], %36 {strides = array<i32>} : memref<8x128xf32, #tpu.memory_space<vmem>>, vector<8x128xf32>,
      } else {
      }
      %c0_i32_16 = arith.constant 0 : i32
      %31 = arith.cmpi eq, %arg0, %c0_i32_16 : i32
      %32 = arith.extui %31 : i1 to i32
      %c0_i32_17 = arith.constant 0 : i32
      %33 = arith.cmpi ne, %32, %c0_i32_17 : i32
      scf.if %33 {
        %c8_i32 = arith.constant 8 : i32
        %34 = arith.muli %arg0, %c8_i32 : i32
        %35 = tpu.iota {dimensions = array<i32: 0>} : vector<1x8x128xi32>
        %36 = tpu.iota {dimensions = array<i32: 1>} : vector<1x8x128xi32>
        %37 = tpu.iota {dimensions = array<i32: 2>} : vector<1x8x128xi32>
        %c8_i32_18 = arith.constant 8 : i32
        %38 = vector.broadcast %c8_i32_18 : i32 to vector<1x8x128xi32>
        %39 = arith.muli %35, %38 : vector<1x8x128xi32>
        %40 = vector.broadcast %34 : i32 to vector<1x8x128xi32>
        %41 = arith.addi %40, %39 : vector<1x8x128xi32>
        %42 = arith.addi %41, %36 : vector<1x8x128xi32>
        %c2_i32 = arith.constant 2 : i32
        %43 = vector.broadcast %c2_i32 : i32 to vector<1x8x128xi32>
        %44 = arith.cmpi slt, %42, %43 : vector<1x8x128xi32>
        %c2_i32_19 = arith.constant 2 : i32
        %45 = vector.broadcast %c2_i32_19 : i32 to vector<1x8x128xi32>
        %46 = arith.cmpi eq, %42, %45 : vector<1x8x128xi32>
        %c0_i32_20 = arith.constant 0 : i32
        %47 = vector.broadcast %c0_i32_20 : i32 to vector<1x8x128xi32>
        %48 = arith.cmpi slt, %37, %47 : vector<1x8x128xi32>
        %49 = arith.andi %46, %48 : vector<1x8x128xi1>
        %50 = arith.ori %44, %49 : vector<1x8x128xi1>
        %cst_21 = arith.constant -1.000000e+30 : f32
        %51 = vector.broadcast %cst_21 : f32 to vector<1x8x128xf32>
        %52 = arith.select %50, %27, %51 : vector<1x8x128xi1>, vector<1x8x128xf32>
        %cst_22 = arith.constant dense<0xFF800000> : vector<8x128xf32>
        %53 = vector.multi_reduction <maximumf>, %52, %cst_22 [0] : vector<1x8x128xf32> to vector<8x128xf32>
        %c0_23 = arith.constant 0 : index
        %c0_24 = arith.constant 0 : index
        %54 = vector.load %arg3[%c0_23, %c0_24] : memref<8x128xf32, #tpu.memory_space<vmem>>, vector<8x128xf32>
        %55 = arith.maximumf %54, %53 : vector<8x128xf32>
        %56 = vector.shape_cast %55 : vector<8x128xf32> to vector<1x8x128xf32>
        %57 = arith.subf %52, %56 : vector<1x8x128xf32>
        %58 = math.exp %57 : vector<1x8x128xf32>
        %cst_25 = arith.constant dense<0.000000e+00> : vector<8x128xf32>
        %59 = vector.multi_reduction <add>, %58, %cst_25 [0] : vector<1x8x128xf32> to vector<8x128xf32>
        %c0_26 = arith.constant 0 : index
        %c0_27 = arith.constant 0 : index
        %60 = vector.load %arg4[%c0_26, %c0_27] : memref<8x128xf32, #tpu.memory_space<vmem>>, vector<8x128xf32>
        %c0_28 = arith.constant 0 : index
        %c0_29 = arith.constant 0 : index
        %61 = vector.load %arg3[%c0_28, %c0_29] : memref<8x128xf32, #tpu.memory_space<vmem>>, vector<8x128xf32>
        %62 = arith.subf %61, %55 : vector<8x128xf32>
        %63 = math.exp %62 : vector<8x128xf32>
        %64 = arith.mulf %60, %63 : vector<8x128xf32>
        %65 = arith.addf %64, %59 : vector<8x128xf32>
        %c0_30 = arith.constant 0 : index
        %c0_31 = arith.constant 0 : index
        %66 = vector.load %arg4[%c0_30, %c0_31] : memref<8x128xf32, #tpu.memory_space<vmem>>, vector<8x128xf32>
        tpu.vector_store %arg4[%c0_30, %c0_31], %65 {strides = array<i32>} : memref<8x128xf32, #tpu.memory_space<vmem>>, vector<8x128xf32>,
        %c0_32 = arith.constant 0 : index
        %c0_33 = arith.constant 0 : index
        %67 = vector.load %arg3[%c0_32, %c0_33] : memref<8x128xf32, #tpu.memory_space<vmem>>, vector<8x128xf32>
        tpu.vector_store %arg3[%c0_32, %c0_33], %55 {strides = array<i32>} : memref<8x128xf32, #tpu.memory_space<vmem>>, vector<8x128xf32>,
      } else {
      }
    } else {
    }
    %c1_i32_2 = arith.constant 1 : i32
    %6 = arith.cmpi sge, %arg0, %c1_i32_2 : i32
    %7 = arith.extui %6 : i1 to i32
    %c0_i32_3 = arith.constant 0 : i32
    %8 = arith.cmpi ne, %7, %c0_i32_3 : i32
    scf.if %8 {
      %c0 = arith.constant 0 : index
      %c0_6 = arith.constant 0 : index
      %c0_7 = arith.constant 0 : index
      %12 = vector.load %arg1[%c0, %c0_6, %c0_7] : memref<1x8x128xf32, #tpu.memory_space<vmem>>, vector<1x8x128xf32>
      %cst = arith.constant 2.500000e-01 : f32
      %13 = vector.broadcast %cst : f32 to vector<1x8x128xf32>
      %14 = arith.addf %12, %13 : vector<1x8x128xf32>
      %cst_8 = arith.constant 0.000000e+00 : f32
      %15 = vector.broadcast %cst_8 : f32 to vector<1x8x128xf32>
      %16 = arith.maximumf %14, %15 : vector<1x8x128xf32>
      %cst_9 = arith.constant 2.500000e-01 : f32
      %17 = vector.broadcast %cst_9 : f32 to vector<1x8x128xf32>
      %18 = arith.subf %12, %17 : vector<1x8x128xf32>
      %19 = arith.mulf %16, %18 : vector<1x8x128xf32>
      %cst_10 = arith.constant 6.400000e+01 : f32
      %20 = vector.broadcast %cst_10 : f32 to vector<1x8x128xf32>
      %21 = arith.mulf %19, %20 : vector<1x8x128xf32>
      %c1_i32_11 = arith.constant 1 : i32
      %22 = arith.cmpi slt, %arg0, %c1_i32_11 : i32
      %23 = arith.extui %22 : i1 to i32
      %c0_i32_12 = arith.constant 0 : i32
      %24 = arith.cmpi ne, %23, %c0_i32_12 : i32
      scf.if %24 {
        %cst_15 = arith.constant dense<0xFF800000> : vector<8x128xf32>
        %28 = vector.multi_reduction <maximumf>, %21, %cst_15 [0] : vector<1x8x128xf32> to vector<8x128xf32>
        %c0_16 = arith.constant 0 : index
        %c0_17 = arith.constant 0 : index
        %29 = vector.load %arg5[%c0_16, %c0_17] : memref<8x128xf32, #tpu.memory_space<vmem>>, vector<8x128xf32>
        %30 = arith.maximumf %29, %28 : vector<8x128xf32>
        %31 = vector.shape_cast %30 : vector<8x128xf32> to vector<1x8x128xf32>
        %32 = arith.subf %21, %31 : vector<1x8x128xf32>
        %33 = math.exp %32 : vector<1x8x128xf32>
        %cst_18 = arith.constant dense<0.000000e+00> : vector<8x128xf32>
        %34 = vector.multi_reduction <add>, %33, %cst_18 [0] : vector<1x8x128xf32> to vector<8x128xf32>
        %c0_19 = arith.constant 0 : index
        %c0_20 = arith.constant 0 : index
        %35 = vector.load %arg6[%c0_19, %c0_20] : memref<8x128xf32, #tpu.memory_space<vmem>>, vector<8x128xf32>
        %c0_21 = arith.constant 0 : index
        %c0_22 = arith.constant 0 : index
        %36 = vector.load %arg5[%c0_21, %c0_22] : memref<8x128xf32, #tpu.memory_space<vmem>>, vector<8x128xf32>
        %37 = arith.subf %36, %30 : vector<8x128xf32>
        %38 = math.exp %37 : vector<8x128xf32>
        %39 = arith.mulf %35, %38 : vector<8x128xf32>
        %40 = arith.addf %39, %34 : vector<8x128xf32>
        %c0_23 = arith.constant 0 : index
        %c0_24 = arith.constant 0 : index
        %41 = vector.load %arg6[%c0_23, %c0_24] : memref<8x128xf32, #tpu.memory_space<vmem>>, vector<8x128xf32>
        tpu.vector_store %arg6[%c0_23, %c0_24], %40 {strides = array<i32>} : memref<8x128xf32, #tpu.memory_space<vmem>>, vector<8x128xf32>,
        %c0_25 = arith.constant 0 : index
        %c0_26 = arith.constant 0 : index
        %42 = vector.load %arg5[%c0_25, %c0_26] : memref<8x128xf32, #tpu.memory_space<vmem>>, vector<8x128xf32>
        tpu.vector_store %arg5[%c0_25, %c0_26], %30 {strides = array<i32>} : memref<8x128xf32, #tpu.memory_space<vmem>>, vector<8x128xf32>,
      } else {
      }
      %c1_i32_13 = arith.constant 1 : i32
      %25 = arith.cmpi eq, %arg0, %c1_i32_13 : i32
      %26 = arith.extui %25 : i1 to i32
      %c0_i32_14 = arith.constant 0 : i32
      %27 = arith.cmpi ne, %26, %c0_i32_14 : i32
      scf.if %27 {
        %c1_i32_15 = arith.constant 1 : i32
        %28 = arith.subi %arg0, %c1_i32_15 : i32
        %c8_i32 = arith.constant 8 : i32
        %29 = arith.muli %28, %c8_i32 : i32
        %30 = tpu.iota {dimensions = array<i32: 0>} : vector<1x8x128xi32>
        %31 = tpu.iota {dimensions = array<i32: 1>} : vector<1x8x128xi32>
        %32 = tpu.iota {dimensions = array<i32: 2>} : vector<1x8x128xi32>
        %c8_i32_16 = arith.constant 8 : i32
        %33 = vector.broadcast %c8_i32_16 : i32 to vector<1x8x128xi32>
        %34 = arith.muli %30, %33 : vector<1x8x128xi32>
        %35 = vector.broadcast %29 : i32 to vector<1x8x128xi32>
        %36 = arith.addi %35, %34 : vector<1x8x128xi32>
        %37 = arith.addi %36, %31 : vector<1x8x128xi32>
        %c4_i32 = arith.constant 4 : i32
        %38 = vector.broadcast %c4_i32 : i32 to vector<1x8x128xi32>
        %39 = arith.cmpi slt, %37, %38 : vector<1x8x128xi32>
        %c4_i32_17 = arith.constant 4 : i32
        %40 = vector.broadcast %c4_i32_17 : i32 to vector<1x8x128xi32>
        %41 = arith.cmpi eq, %37, %40 : vector<1x8x128xi32>
        %c0_i32_18 = arith.constant 0 : i32
        %42 = vector.broadcast %c0_i32_18 : i32 to vector<1x8x128xi32>
        %43 = arith.cmpi slt, %32, %42 : vector<1x8x128xi32>
        %44 = arith.andi %41, %43 : vector<1x8x128xi1>
        %45 = arith.ori %39, %44 : vector<1x8x128xi1>
        %cst_19 = arith.constant -1.000000e+30 : f32
        %46 = vector.broadcast %cst_19 : f32 to vector<1x8x128xf32>
        %47 = arith.select %45, %21, %46 : vector<1x8x128xi1>, vector<1x8x128xf32>
        %cst_20 = arith.constant dense<0xFF800000> : vector<8x128xf32>
        %48 = vector.multi_reduction <maximumf>, %47, %cst_20 [0] : vector<1x8x128xf32> to vector<8x128xf32>
        %c0_21 = arith.constant 0 : index
        %c0_22 = arith.constant 0 : index
        %49 = vector.load %arg5[%c0_21, %c0_22] : memref<8x128xf32, #tpu.memory_space<vmem>>, vector<8x128xf32>
        %50 = arith.maximumf %49, %48 : vector<8x128xf32>
        %51 = vector.shape_cast %50 : vector<8x128xf32> to vector<1x8x128xf32>
        %52 = arith.subf %47, %51 : vector<1x8x128xf32>
        %53 = math.exp %52 : vector<1x8x128xf32>
        %cst_23 = arith.constant dense<0.000000e+00> : vector<8x128xf32>
        %54 = vector.multi_reduction <add>, %53, %cst_23 [0] : vector<1x8x128xf32> to vector<8x128xf32>
        %c0_24 = arith.constant 0 : index
        %c0_25 = arith.constant 0 : index
        %55 = vector.load %arg6[%c0_24, %c0_25] : memref<8x128xf32, #tpu.memory_space<vmem>>, vector<8x128xf32>
        %c0_26 = arith.constant 0 : index
        %c0_27 = arith.constant 0 : index
        %56 = vector.load %arg5[%c0_26, %c0_27] : memref<8x128xf32, #tpu.memory_space<vmem>>, vector<8x128xf32>
        %57 = arith.subf %56, %50 : vector<8x128xf32>
        %58 = math.exp %57 : vector<8x128xf32>
        %59 = arith.mulf %55, %58 : vector<8x128xf32>
        %60 = arith.addf %59, %54 : vector<8x128xf32>
        %c0_28 = arith.constant 0 : index
        %c0_29 = arith.constant 0 : index
        %61 = vector.load %arg6[%c0_28, %c0_29] : memref<8x128xf32, #tpu.memory_space<vmem>>, vector<8x128xf32>
        tpu.vector_store %arg6[%c0_28, %c0_29], %60 {strides = array<i32>} : memref<8x128xf32, #tpu.memory_space<vmem>>, vector<8x128xf32>,
        %c0_30 = arith.constant 0 : index
        %c0_31 = arith.constant 0 : index
        %62 = vector.load %arg5[%c0_30, %c0_31] : memref<8x128xf32, #tpu.memory_space<vmem>>, vector<8x128xf32>
        tpu.vector_store %arg5[%c0_30, %c0_31], %50 {strides = array<i32>} : memref<8x128xf32, #tpu.memory_space<vmem>>, vector<8x128xf32>,
      } else {
      }
    } else {
    }
    %c1_i32_4 = arith.constant 1 : i32
    %9 = arith.cmpi eq, %arg0, %c1_i32_4 : i32
    %10 = arith.extui %9 : i1 to i32
    %c0_i32_5 = arith.constant 0 : i32
    %11 = arith.cmpi ne, %10, %c0_i32_5 : i32
    scf.if %11 {
      %c0 = arith.constant 0 : index
      %c0_6 = arith.constant 0 : index
      %12 = vector.load %arg3[%c0, %c0_6] : memref<8x128xf32, #tpu.memory_space<vmem>>, vector<8x128xf32>
      %13 = vector.shape_cast %12 : vector<8x128xf32> to vector<1x8x128xf32>
      %cst = arith.constant dense<0xFF800000> : vector<1xf32>
      %14 = vector.multi_reduction <maximumf>, %13, %cst [1, 2] : vector<1x8x128xf32> to vector<1xf32>
      %15 = vector.shape_cast %14 : vector<1xf32> to vector<1x1x1xf32>
      %16 = vector.extract %15[0, 0, 0] : f32 from vector<1x1x1xf32>
      %c0_7 = arith.constant 0 : index
      %c0_8 = arith.constant 0 : index
      %17 = vector.load %arg4[%c0_7, %c0_8] : memref<8x128xf32, #tpu.memory_space<vmem>>, vector<8x128xf32>
      %c0_9 = arith.constant 0 : index
      %c0_10 = arith.constant 0 : index
      %18 = vector.load %arg3[%c0_9, %c0_10] : memref<8x128xf32, #tpu.memory_space<vmem>>, vector<8x128xf32>
      %19 = vector.broadcast %16 : f32 to vector<8x128xf32>
      %20 = arith.subf %18, %19 : vector<8x128xf32>
      %21 = math.exp %20 : vector<8x128xf32>
      %22 = arith.mulf %17, %21 : vector<8x128xf32>
      %23 = vector.shape_cast %22 : vector<8x128xf32> to vector<1x8x128xf32>
      %cst_11 = arith.constant dense<0.000000e+00> : vector<1xf32>
      %24 = vector.multi_reduction <add>, %23, %cst_11 [1, 2] : vector<1x8x128xf32> to vector<1xf32>
      %25 = vector.shape_cast %24 : vector<1xf32> to vector<1x1x1xf32>
      %26 = vector.extract %25[0, 0, 0] : f32 from vector<1x1x1xf32>
      %27 = math.log %26 : f32
      %28 = arith.addf %16, %27 : f32
      %c0_12 = arith.constant 0 : index
      %c0_13 = arith.constant 0 : index
      %29 = vector.load %arg5[%c0_12, %c0_13] : memref<8x128xf32, #tpu.memory_space<vmem>>, vector<8x128xf32>
      %30 = vector.shape_cast %29 : vector<8x128xf32> to vector<1x8x128xf32>
      %cst_14 = arith.constant dense<0xFF800000> : vector<1xf32>
      %31 = vector.multi_reduction <maximumf>, %30, %cst_14 [1, 2] : vector<1x8x128xf32> to vector<1xf32>
      %32 = vector.shape_cast %31 : vector<1xf32> to vector<1x1x1xf32>
      %33 = vector.extract %32[0, 0, 0] : f32 from vector<1x1x1xf32>
      %c0_15 = arith.constant 0 : index
      %c0_16 = arith.constant 0 : index
      %34 = vector.load %arg6[%c0_15, %c0_16] : memref<8x128xf32, #tpu.memory_space<vmem>>, vector<8x128xf32>
      %c0_17 = arith.constant 0 : index
      %c0_18 = arith.constant 0 : index
      %35 = vector.load %arg5[%c0_17, %c0_18] : memref<8x128xf32, #tpu.memory_space<vmem>>, vector<8x128xf32>
      %36 = vector.broadcast %33 : f32 to vector<8x128xf32>
      %37 = arith.subf %35, %36 : vector<8x128xf32>
      %38 = math.exp %37 : vector<8x128xf32>
      %39 = arith.mulf %34, %38 : vector<8x128xf32>
      %40 = vector.shape_cast %39 : vector<8x128xf32> to vector<1x8x128xf32>
      %cst_19 = arith.constant dense<0.000000e+00> : vector<1xf32>
      %41 = vector.multi_reduction <add>, %40, %cst_19 [1, 2] : vector<1x8x128xf32> to vector<1xf32>
      %42 = vector.shape_cast %41 : vector<1xf32> to vector<1x1x1xf32>
      %43 = vector.extract %42[0, 0, 0] : f32 from vector<1x1x1xf32>
      %44 = math.log %43 : f32
      %45 = arith.addf %33, %44 : f32
      %46 = arith.addf %45, %28 : f32
      %cst_20 = arith.constant 0.000000e+00 : f32
      %47 = arith.maximumf %46, %cst_20 : f32
      %48 = math.absf %46 : f32
      %cst_21 = arith.constant 0.000000e+00 : f32
      %49 = arith.subf %cst_21, %48 : f32
      %50 = math.exp %49 : f32
      %51 = math.log1p %50 : f32
      %52 = arith.addf %47, %51 : f32
      %c0_22 = arith.constant 0 : index
      %c0_23 = arith.constant 0 : index
      %53 = memref.load %arg2[%c0_22, %c0_23] : memref<1x1xf32, #tpu.memory_space<smem>>
      memref.store %52, %arg2[%c0_22, %c0_23] : memref<1x1xf32, #tpu.memory_space<smem>>
    } else {
    }
    return
  }
  func.func @transform_0(%arg0: i32) -> (i32, i32, i32) {
    %c0_i32 = arith.constant 0 : i32
    %c0_i32_0 = arith.constant 0 : i32
    %c0_i32_1 = arith.constant 0 : i32
    return %arg0, %c0_i32, %c0_i32_0 : i32, i32, i32
  }
  func.func @transform_1(%arg0: i32) -> (i32, i32) {
    %c0_i32 = arith.constant 0 : i32
    %c0_i32_0 = arith.constant 0 : i32
    %c0_i32_1 = arith.constant 0 : i32
    return %c0_i32, %c0_i32_0 : i32, i32
  }
}

</mosaic_0001>

<llo_original>
// kernel: tpu_custom_call.1
$region0: #{tpu_custom_call.1}
  #allocation0 [shape = 'u32[]', space=smem, size = 0x4, offset = 0x4, fixed_abs, tag = 'smem constant byte address 0x4 - core index']
  #allocation1 [shape = 'u32[72,128]{1,0:T(1,128)}', space=vmem, size = 0x9000, scoped, tag = 'internal scratch']
  #allocation2 [shape = 'f32[8,128]{1,0:T(8,128)}', space=vmem, size = 0x1000, scoped, tag = 'scratch operand']
  #allocation3 [shape = 'f32[8,128]{1,0:T(8,128)}', space=vmem, size = 0x1000, scoped, tag = 'scratch operand']
  #allocation4 [shape = 'f32[8,128]{1,0:T(8,128)}', space=vmem, size = 0x1000, scoped, tag = 'scratch operand']
  #allocation5 [shape = 'f32[8,128]{1,0:T(8,128)}', space=vmem, size = 0x1000, scoped, tag = 'scratch operand']
  %s0 = inlined_call_operand.hbm [shape: f32[2,8,128], index: 0, kind: input, shape index: {}]
  %s1 = inlined_call_operand.hbm [shape: f32[1,1], index: 1, kind: output, shape index: {}]
  %s2 = sld [smem:[#allocation0]]
  $region73: #{tpu_custom_call.1} parent=0
    _
  %s4 = ssub.s32 1, %s2
  %s5 = scalar_select 0, %s4, %s2
  $region1: #{tpu_custom_call.1} parent=0
    #allocation6 [shape = 'u8[8192]{0}', space=vmem, size = 0x2000, scoped, tag = 'input window, operand 0']
    #allocation7 [shape = 's32[2]{0}', space=sflag, size = 0x8, scoped, tag = 'scoped memory for tpu_custom_call.1']
    #allocation8 [shape = 's32[2]{0}', space=sflag, size = 0x8, scoped, tag = 'scoped memory for tpu_custom_call.1']
    #allocation9 [shape = 'u8[512]{0}', space=smem, size = 0x200, scoped, tag = 'output window, operand 0, single buffered']
    %6 = vsyncpa [#allocation7], 0
    %s7 = scalar_lea.sflag [#allocation7], 1
    %8 = vsyncpa %s7, 0
    %9 = vsyncpa [#allocation8], 0
    loop: start=0, step=1, limit=4
    $region2: #{tpu_custom_call.1} parent=1 // loop_pre_header
      _
    $region3: #{tpu_custom_call.1} parent=1 // loop_header
      %s11 = sphi 0, %s15
      %p12 = scmp.ge.s32.totalorder %s11, 4
      %s21 = sphi 0, %s23
      %s24 = sphi 0, %s21
      %s25 = sphi 0, %s24
      %s41 = sphi 0, %s25
      %s45 = sphi 0, %s45
      %s47 = sphi 0, %s45
      %s48 = sphi 0, %s47
      %s62 = sphi 0, %s48
    $region4: #{tpu_custom_call.1} parent=1 // loop_header_branch
      %14 = sbr.rel (%p12) target = $region8
    $region5: #{tpu_custom_call.1} parent=1 // loop_body
      %s16 = ssub.s32 %s11, 1
      %s17 = ssub.s32 %s11, 2
      %s18 = sadd.s32 %s11, 1
      %s19 = ssub.s32 %s11, %s18
      %p20 = scmp.eq.s32.totalorder %s19, 0
      %s22 = sadd.s32 %s21, 1
      %s23 = scalar_select %p20, %s21, %s22
      %p26 = pneg %p20
      %p27 = scmp.eq.s32.totalorder %s11, 1
      %p28 = por %p26, %p27
      %p29 = scmp.ne.s32.totalorder %s21, %s24
      %p30 = scmp.eq.s32.totalorder %s11, 0
      %p31 = por %p29, %p30
      %p32 = scmp.ne.s32.totalorder %s21, %s24
      %p33 = scmp.eq.s32.totalorder %s16, 1
      %p34 = por %p32, %p33
      %p35 = scmp.ne.s32.totalorder %s24, %s25
      %p36 = scmp.eq.s32.totalorder %s16, 0
      %p37 = por %p35, %p36
      %p38 = scmp.ne.s32.totalorder %s24, %s25
      %p39 = scmp.eq.s32.totalorder %s17, 1
      %p40 = por %p38, %p39
      %p42 = scmp.ne.s32.totalorder %s25, %s41
      %p43 = scmp.eq.s32.totalorder %s17, 0
      %p44 = por %p42, %p43
      %s46 = sadd.s32 %s45, 1
      %p49 = scmp.eq.s32.totalorder %s11, 1
      %p50 = scmp.ne.s32.totalorder %s45, %s47
      %p51 = scmp.eq.s32.totalorder %s11, 0
      %p52 = por %p50, %p51
      %p53 = scmp.ne.s32.totalorder %s45, %s47
      %p54 = scmp.eq.s32.totalorder %s16, 1
      %p55 = por %p53, %p54
      %p56 = scmp.ne.s32.totalorder %s47, %s48
      %p57 = scmp.eq.s32.totalorder %s16, 0
      %p58 = por %p56, %p57
      %p59 = scmp.ne.s32.totalorder %s47, %s48
      %p60 = scmp.eq.s32.totalorder %s17, 1
      %p61 = por %p59, %p60
      %p63 = scmp.ne.s32.totalorder %s48, %s62
      %p64 = scmp.eq.s32.totalorder %s17, 0
      %p65 = por %p63, %p64
      %p66 = scmp.le.s32.totalorder 1, %s11
      %p67 = scmp.lt.s32.totalorder %s11, 3
      %p68 = pnand %p66, %p67
      %p69 = pneg %p68
      // Predicated region
      $region9: #{tpu_custom_call.1} parent=5 // pred_check
        _
      $region10: #{tpu_custom_call.1} parent=5 // pred_check_branch
        %71 = sbr.rel (%p68) target = $region12
      $region11: #{tpu_custom_call.1} parent=5 // pred_region
        %s72 = ssub.s32 %s11, 1
      $region12: #{tpu_custom_call.1} parent=5 // pred_fallthru
        _
      %p73 = scmp.lt.s32.totalorder %s11, 2
      // Predicated region
      $region13: #{tpu_custom_call.1} parent=5 // pred_check
        %p74 = pneg %p73
      $region14: #{tpu_custom_call.1} parent=5 // pred_check_branch
        %76 = sbr.rel (%p74) target = $region16
      $region15: #{tpu_custom_call.1} parent=5 // pred_region
        // Predicated region
        $region17: #{tpu_custom_call.1} parent=15 // pred_check
          %p77 = pneg %p31
        $region18: #{tpu_custom_call.1} parent=15 // pred_check_branch
          %79 = sbr.rel (%p77) target = $region20
        $region19: #{tpu_custom_call.1} parent=15 // pred_region
          %s80 = sand.u32 %s21, 1
          %s81 = scalar_lea.sflag [#allocation7], %s80
          %s82 = sand.u32 %s21, 1
          %s83 = smul.addr %s82, 8
          %s84 = scalar_lea.vmem [#allocation6], %s83
          %86 = vsyncadd %s81, 0
          %s87 = smul.addr %s11, 8
          %s88 = scalar_lea.hbm %s0, %s87
          %s90 = sshll.u32 %s88, 4
          %s91 = int_to_ptr.hbm [resolvable:$true] %s90
          %s92 = sshll.u32 %s84, 4
          %s93 = int_to_ptr.vmem [resolvable:$true] %s92
          %95 = dma.hbm_to_vmem [thread:$0]  %s91, 128, %s93, %s81
        $region20: #{tpu_custom_call.1} parent=15 // pred_fallthru
          _
      $region16: #{tpu_custom_call.1} parent=5 // pred_fallthru
        _
      %p96 = scmp.le.s32.totalorder 1, %s11
      %p97 = scmp.lt.s32.totalorder %s11, 3
      %p98 = pnand %p96, %p97
      %p99 = pneg %p98
      // Predicated region
      $region21: #{tpu_custom_call.1} parent=5 // pred_check
        _
      $region22: #{tpu_custom_call.1} parent=5 // pred_check_branch
        %101 = sbr.rel (%p98) target = $region24
      $region23: #{tpu_custom_call.1} parent=5 // pred_region
        %s102 = ssub.s32 %s11, 1
        %s103 = sand.u32 %s24, 1
        %s104 = scalar_lea.sflag [#allocation7], %s103
        %s105 = sand.u32 %s24, 1
        %s106 = smul.addr %s105, 8
        %s107 = scalar_lea.vmem [#allocation6], %s106
        // Predicated region
        $region25: #{tpu_custom_call.1} parent=23 // pred_check
          %p108 = pneg %p37
        $region26: #{tpu_custom_call.1} parent=23 // pred_check_branch
          %110 = sbr.rel (%p108) target = $region28
        $region27: #{tpu_custom_call.1} parent=23 // pred_region
          %112 = dma.done %s104, 128
        $region28: #{tpu_custom_call.1} parent=23 // pred_fallthru
          _
        %s113 = sand.u32 %s24, 1
        %s114 = scalar_lea.sflag [#allocation7], %s113
        %s115 = sand.u32 %s24, 1
        %s116 = smul.addr %s115, 8
        %s117 = scalar_lea.vmem [#allocation6], %s116
        %p118 = pneg %p37
        %p119 = pneg %p34
        %p120 = pneg %p58
        %p121 = pneg %p55
        %p122 = scmp.eq.s32.totalorder %s16, 0
        // Predicated region
        $region29: #{tpu_custom_call.1} parent=23 // pred_check
          %p123 = pneg %p122
        $region30: #{tpu_custom_call.1} parent=23 // pred_check_branch
          %125 = sbr.rel (%p123) target = $region32
        $region31: #{tpu_custom_call.1} parent=23 // pred_region
          %126 = vst [vmem:[#allocation2] sm:$0xff] -1e+30
          %127 = vst [vmem:[#allocation3] sm:$0xff] 0.0
          %128 = vst [vmem:[#allocation4] sm:$0xff] -1e+30
          %129 = vst [vmem:[#allocation5] sm:$0xff] 0.0
        $region32: #{tpu_custom_call.1} parent=23 // pred_fallthru
          _
        %p130 = scmp.lt.s32.totalorder %s16, 1
        // Predicated region
        $region33: #{tpu_custom_call.1} parent=23 // pred_check
          %p131 = pneg %p130
        $region34: #{tpu_custom_call.1} parent=23 // pred_check_branch
          %133 = sbr.rel (%p131) target = $region36
        $region35: #{tpu_custom_call.1} parent=23 // pred_region
          %v134 = vld [vmem:[%s107] sm:$0xff]
          %v135 = vsub.f32 0.0, %v134
          %v136 = vadd.f32 %v135, 1.0
          %v137 = vadd.f32 %v136, 0.25
          %v138 = vmax.f32 %v137, 0.0
          %v139 = vsub.f32 0.0, %v138
          %v140 = vsub.f32 %v134, 0.75
          %v141 = vmul.f32 %v139, %v140
          %v142 = vmul.f32 %v141, 64.0
          %p143 = scmp.lt.s32.totalorder %s16, 0
          // Predicated region
          $region37: #{tpu_custom_call.1} parent=35 // pred_check
            %p144 = pneg %p143
          $region38: #{tpu_custom_call.1} parent=35 // pred_check_branch
            %146 = sbr.rel (%p144) target = $region40
          $region39: #{tpu_custom_call.1} parent=35 // pred_region
            %v147 = vld [vmem:[#allocation2] sm:$0xff]
            %v148 = vmax.f32 %v147, %v142
            %v149 = vsub.f32 %v142, %v148
            %v150 = vmul.f32 %v149, 1.442695
            %v151 = vpow.pop %v150
            %v152 = vadd.f32 %v151, 0.0
            %v153 = vld [vmem:[#allocation3] sm:$0xff]
            %v154 = vsub.f32 %v147, %v148
            %v155 = vmul.f32 %v154, 1.442695
            %v156 = vpow.pop %v155
            %v157 = vmul.f32 %v153, %v156
            %v158 = vadd.f32 %v157, %v152
            %159 = vst [vmem:[#allocation3] sm:$0xff] %v158
            %160 = vst [vmem:[#allocation2] sm:$0xff] %v148
          $region40: #{tpu_custom_call.1} parent=35 // pred_fallthru
            _
          // Predicated region
          $region41: #{tpu_custom_call.1} parent=35 // pred_check
            %p161 = pneg %p122
          $region42: #{tpu_custom_call.1} parent=35 // pred_check_branch
            %163 = sbr.rel (%p161) target = $region44
          $region43: #{tpu_custom_call.1} parent=35 // pred_region
            %s164 = smul.u32 %s16, 8
            %v165 = vlaneseq
            %v166 = vshrl.u32 %v165, 7
            %v167 = vlaneseq
            %v168 = vand.u32 %v167, 127
            %v169 = vstv %s164
            %v170 = vadd.s32 %v169, %v166
            %vm171 = vcmp.lt.s32.totalorder %v170, 2
            %vm172 = vcmp.eq.s32.totalorder %v170, 2
            %vm173 = vcmp.lt.s32.totalorder %v168, 0
            %vm174 = vmand %vm172, %vm173
            %vm175 = vmor %vm171, %vm174
            %v176 = vsel %vm175, %v142, -1e+30
            %v177 = vld [vmem:[#allocation2] sm:$0xff]
            %v178 = vmax.f32 %v177, %v176
            %v179 = vsub.f32 %v176, %v178
            %v180 = vmul.f32 %v179, 1.442695
            %v181 = vpow.pop %v180
            %v182 = vadd.f32 %v181, 0.0
            %v183 = vld [vmem:[#allocation3] sm:$0xff]
            %v184 = vsub.f32 %v177, %v178
            %v185 = vmul.f32 %v184, 1.442695
            %v186 = vpow.pop %v185
            %v187 = vmul.f32 %v183, %v186
            %v188 = vadd.f32 %v187, %v182
            %189 = vst [vmem:[#allocation3] sm:$0xff] %v188
            %190 = vst [vmem:[#allocation2] sm:$0xff] %v178
          $region44: #{tpu_custom_call.1} parent=35 // pred_fallthru
            _
        $region36: #{tpu_custom_call.1} parent=23 // pred_fallthru
          _
        %p191 = scmp.ge.s32.totalorder %s16, 1
        // Predicated region
        $region45: #{tpu_custom_call.1} parent=23 // pred_check
          %p192 = pneg %p191
        $region46: #{tpu_custom_call.1} parent=23 // pred_check_branch
          %194 = sbr.rel (%p192) target = $region48
        $region47: #{tpu_custom_call.1} parent=23 // pred_region
          %v195 = vld [vmem:[%s107] sm:$0xff]
          %v196 = vadd.f32 %v195, 0.25
          %v197 = vmax.f32 %v196, 0.0
          %v198 = vsub.f32 %v195, 0.25
          %v199 = vmul.f32 %v197, %v198
          %v200 = vmul.f32 %v199, 64.0
          // Predicated region
          $region49: #{tpu_custom_call.1} parent=47 // pred_check
            %p201 = pneg %p130
          $region50: #{tpu_custom_call.1} parent=47 // pred_check_branch
            %203 = sbr.rel (%p201) target = $region52
          $region51: #{tpu_custom_call.1} parent=47 // pred_region
            %v204 = vld [vmem:[#allocation4] sm:$0xff]
            %v205 = vmax.f32 %v204, %v200
            %v206 = vsub.f32 %v200, %v205
            %v207 = vmul.f32 %v206, 1.442695
            %v208 = vpow.pop %v207
            %v209 = vadd.f32 %v208, 0.0
            %v210 = vld [vmem:[#allocation5] sm:$0xff]
            %v211 = vsub.f32 %v204, %v205
            %v212 = vmul.f32 %v211, 1.442695
            %v213 = vpow.pop %v212
            %v214 = vmul.f32 %v210, %v213
            %v215 = vadd.f32 %v214, %v209
            %216 = vst [vmem:[#allocation5] sm:$0xff] %v215
            %217 = vst [vmem:[#allocation4] sm:$0xff] %v205
          $region52: #{tpu_custom_call.1} parent=47 // pred_fallthru
            _
          %p218 = scmp.eq.s32.totalorder %s16, 1
          // Predicated region
          $region53: #{tpu_custom_call.1} parent=47 // pred_check
            %p219 = pneg %p218
          $region54: #{tpu_custom_call.1} parent=47 // pred_check_branch
            %221 = sbr.rel (%p219) target = $region56
          $region55: #{tpu_custom_call.1} parent=47 // pred_region
            %s222 = ssub.s32 %s16, 1
            %s223 = smul.u32 %s222, 8
            %v224 = vlaneseq
            %v225 = vshrl.u32 %v224, 7
            %v226 = vlaneseq
            %v227 = vand.u32 %v226, 127
            %v228 = vstv %s223
            %v229 = vadd.s32 %v228, %v225
            %vm230 = vcmp.lt.s32.totalorder %v229, 4
            %vm231 = vcmp.eq.s32.totalorder %v229, 4
            %vm232 = vcmp.lt.s32.totalorder %v227, 0
            %vm233 = vmand %vm231, %vm232
            %vm234 = vmor %vm230, %vm233
            %v235 = vsel %vm234, %v200, -1e+30
            %v236 = vld [vmem:[#allocation4] sm:$0xff]
            %v237 = vmax.f32 %v236, %v235
            %v238 = vsub.f32 %v235, %v237
            %v239 = vmul.f32 %v238, 1.442695
            %v240 = vpow.pop %v239
            %v241 = vadd.f32 %v240, 0.0
            %v242 = vld [vmem:[#allocation5] sm:$0xff]
            %v243 = vsub.f32 %v236, %v237
            %v244 = vmul.f32 %v243, 1.442695
            %v245 = vpow.pop %v244
            %v246 = vmul.f32 %v242, %v245
            %v247 = vadd.f32 %v246, %v241
            %248 = vst [vmem:[#allocation5] sm:$0xff] %v247
            %249 = vst [vmem:[#allocation4] sm:$0xff] %v237
          $region56: #{tpu_custom_call.1} parent=47 // pred_fallthru
            _
        $region48: #{tpu_custom_call.1} parent=23 // pred_fallthru
          _
        %p250 = scmp.eq.s32.totalorder %s16, 1
        // Predicated region
        $region57: #{tpu_custom_call.1} parent=23 // pred_check
          %p251 = pneg %p250
        $region58: #{tpu_custom_call.1} parent=23 // pred_check_branch
          %253 = sbr.rel (%p251) target = $region60
        $region59: #{tpu_custom_call.1} parent=23 // pred_region
          %v254 = vld [vmem:[#allocation2] sm:$0xff]
          %255 = vmax.xlane.f32.xlu0 %v254
          %v256 = vpop.xlane.xlu0 %255
          %v257 = vrot.slane %v256, 4
          %v258 = vmax.f32 %v256, %v257
          %v259 = vrot.slane %v258, 2
          %v260 = vmax.f32 %v258, %v259
          %v261 = vrot.slane %v260, 1
          %v262 = vmax.f32 %v260, %v261
          %s263 = vtos %v262
          %v264 = vld [vmem:[#allocation3] sm:$0xff]
          %v265 = vstv %s263
          %v266 = vsub.f32 %v254, %v265
          %v267 = vmul.f32 %v266, 1.442695
          %v268 = vpow.pop %v267
          %v269 = vmul.f32 %v264, %v268
          %270 = vadd.xlane.f32.xlu0 %v269
          %v271 = vpop.xlane.xlu0 %270
          %v272 = vrot.slane %v271, 4
          %v273 = vadd.f32 %v271, %v272
          %v274 = vrot.slane %v273, 2
          %v275 = vadd.f32 %v273, %v274
          %v276 = vrot.slane %v275, 1
          %v277 = vadd.f32 %v275, %v276
          %s278 = vtos %v277
          %v279 = vstv %s278
          %v280 = vlog2.pop %v279
          %v281 = vmul.f32 %v280, 0.6931472
          %s282 = vtos %v281
          %s283 = sadd.f32 %s263, %s282
          %v284 = vld [vmem:[#allocation4] sm:$0xff]
          %285 = vmax.xlane.f32.xlu0 %v284
          %v286 = vpop.xlane.xlu0 %285
          %v287 = vrot.slane %v286, 4
          %v288 = vmax.f32 %v286, %v287
          %v289 = vrot.slane %v288, 2
          %v290 = vmax.f32 %v288, %v289
          %v291 = vrot.slane %v290, 1
          %v292 = vmax.f32 %v290, %v291
          %s293 = vtos %v292
          %v294 = vld [vmem:[#allocation5] sm:$0xff]
          %v295 = vstv %s293
          %v296 = vsub.f32 %v284, %v295
          %v297 = vmul.f32 %v296, 1.442695
          %v298 = vpow.pop %v297
          %v299 = vmul.f32 %v294, %v298
          %300 = vadd.xlane.f32.xlu0 %v299
          %v301 = vpop.xlane.xlu0 %300
          %v302 = vrot.slane %v301, 4
          %v303 = vadd.f32 %v301, %v302
          %v304 = vrot.slane %v303, 2
          %v305 = vadd.f32 %v303, %v304
          %v306 = vrot.slane %v305, 1
          %v307 = vadd.f32 %v305, %v306
          %s308 = vtos %v307
          %v309 = vstv %s308
          %v310 = vlog2.pop %v309
          %v311 = vmul.f32 %v310, 0.6931472
          %s312 = vtos %v311
          %s313 = sadd.f32 %s293, %s312
          %s314 = sadd.f32 %s313, %s283
          %s315 = smax.f32 %s314, 0.0
          %s316 = sand.u32 2147483647, %s314
          %s317 = ssub.f32 0.0, %s316
          %v318 = vstv %s317
          %v319 = vmul.f32 %v318, 1.442695
          %v320 = vpow.pop %v319
          %s321 = vtos %v320
          %v322 = vstv %s321
          %v323 = vadd.f32 %v322, 1.0
          %v324 = vlog2.pop %v323
          %v325 = vmul.f32 %v324, 0.6931472
          %v326 = vmul.f32 -0.5, %v322
          %v327 = vadd.f32 %v326, 1.0
          %v328 = vmul.f32 %v327, %v322
          %v329 = vand.u32 2147483647, %v322
          %vm330 = vcmp.lt.f32.partialorder %v329, 0.0004427343
          %v331 = vsel %vm330, %v328, %v325
          %s332 = vtos %v331
          %s333 = sadd.f32 %s315, %s332
          %s334 = scalar_lea.smem [#allocation9], 0
          %335 = sst [smem:[%s334]] %s333
        $region60: #{tpu_custom_call.1} parent=23 // pred_fallthru
          _
        // Predicated region
        $region61: #{tpu_custom_call.1} parent=23 // pred_check
          %p336 = pneg %p55
        $region62: #{tpu_custom_call.1} parent=23 // pred_check_branch
          %338 = sbr.rel (%p336) target = $region64
        $region63: #{tpu_custom_call.1} parent=23 // pred_region
          %340 = vsyncadd [#allocation8], 0
          %s342 = sshll.u32 %s1, 4
          %s343 = int_to_ptr.hbm [resolvable:$true] %s342
          %345 = dma.smem_to_hbm [#allocation9], 16, %s343, [#allocation8]
        $region64: #{tpu_custom_call.1} parent=23 // pred_fallthru
          _
        // Predicated region
        $region65: #{tpu_custom_call.1} parent=23 // pred_check
          %p346 = pneg %p55
        $region66: #{tpu_custom_call.1} parent=23 // pred_check_branch
          %348 = sbr.rel (%p346) target = $region68
        $region67: #{tpu_custom_call.1} parent=23 // pred_region
          %350 = dma.done [#allocation8], 16
        $region68: #{tpu_custom_call.1} parent=23 // pred_fallthru
          _
        %351 = sfence
      $region24: #{tpu_custom_call.1} parent=5 // pred_fallthru
        _
      %p352 = scmp.le.s32.totalorder 2, %s11
      // Predicated region
      $region69: #{tpu_custom_call.1} parent=5 // pred_check
        %p353 = pneg %p352
      $region70: #{tpu_custom_call.1} parent=5 // pred_check_branch
        %355 = sbr.rel (%p353) target = $region72
      $region71: #{tpu_custom_call.1} parent=5 // pred_region
        %s356 = ssub.s32 %s11, 2
      $region72: #{tpu_custom_call.1} parent=5 // pred_fallthru
        _
    $region6: #{tpu_custom_call.1} parent=1 // loop_footer
      %s15 = sadd.s32 1, %s11
    $region7: #{tpu_custom_call.1} parent=1 // loop_footer_branch
      %10 = sbr.rel target = $region3
    $region8: #{tpu_custom_call.1} parent=1 // loop_exit
      _
    %357 = vsyncpa [#allocation7], 1
    %s358 = scalar_lea.sflag [#allocation7], 1
    %359 = vsyncpa %s358, 1
    %360 = vsyncpa [#allocation8], 1
    %s361 = scalar_lea.sflag [#allocation8], 1
    %362 = vsyncpa %s361, 1

</llo_original>
